<compile_context>
chip_gen: v7x
topology: tpu7x:2x2x1
jax: 0.10.0
libtpu: 0.0.40
codegen_flags: <defaults>
</compile_context>

<pallas_src>
from functools import partial

import jax
import jax.numpy as jnp
from jax.experimental import pallas as pl
from jax.experimental.pallas import tpu as pltpu


def _change_similarity_kernel(x1_ref, x2_ref, lbl_ref, out_ref, acc_ref, *,
                              hw, tile, num_t, maybe_masked):
    ti = pl.program_id(2)

    @pl.when(ti == 0)
    def _():
        acc_ref[...] = jnp.zeros_like(acc_ref)

    x1 = x1_ref[...].astype(jnp.float32)      # (C, TILE) — C on sublanes
    x2 = x2_ref[...].astype(jnp.float32)      # (C, TILE)
    unchanged = lbl_ref[...] == 0             # (1, TILE) bool (integer compare)

    # Cosine similarity is scale-invariant per column, so the softmax
    # normalization (row-sum + divide) is skipped entirely.
    e1 = jnp.exp(x1 - jnp.max(x1, axis=0, keepdims=True))
    e2 = jnp.exp(x2 - jnp.max(x2, axis=0, keepdims=True))

    dot = jnp.sum(e1 * e2, axis=0, keepdims=True)    # (1, TILE)
    s1 = jnp.sum(e1 * e1, axis=0, keepdims=True)     # (1, TILE)
    s2 = jnp.sum(e2 * e2, axis=0, keepdims=True)     # (1, TILE)
    # s1, s2 >= 1 (the exp(0) = 1 term), so the reference's eps clamp is
    # inert; cos > 0, so max(cos, 0) for changed pixels is just cos.
    cos = dot * jax.lax.rsqrt(s1 * s2)
    per = jnp.where(unchanged, 1.0 - cos, cos)       # (1, TILE) f32
    # NOTE: matches the reference target = (label==0 ? +1 : -1) for any
    # non-negative label values (0/1 in practice).

    if maybe_masked:
        # Only tiles that cross (or lie past) the end of H*W pay for the
        # iota/compare/select; OOB lanes hold garbage (possibly NaN/Inf after
        # exp) but jnp.where is a true select, so they are zeroed safely.
        start = (pl.program_id(1) * num_t + ti) * tile
        boundary = start + tile > hw

        @pl.when(boundary)
        def _():
            col = start + jax.lax.broadcasted_iota(jnp.int32, (1, tile), 1)
            acc_ref[...] = acc_ref[...] + jnp.where(col < hw, per, 0.0)

        @pl.when(jnp.logical_not(boundary))
        def _():
            acc_ref[...] = acc_ref[...] + per
    else:
        acc_ref[...] = acc_ref[...] + per

    @pl.when(ti == num_t - 1)
    def _():
        s = jnp.sum(acc_ref[...], axis=1, keepdims=True)     # (1, 1)
        out_ref[...] = jnp.broadcast_to(s, out_ref.shape)     # (1, 128) lane-dense


def change_similarity_loss(x1, x2, label_change):
    """x1, x2: (B, C, H, W) float logits; label_change: (B, H, W) 0/1."""
    b, c, h, w = x1.shape
    hw = h * w
    n = b * hw

    # Free views: no transpose, no padding, no label dtype cast (extra HBM
    # passes removed per perf review).
    x1r = x1.reshape(b, c, hw)
    x2r = x2.reshape(b, c, hw)
    lblr = label_change.reshape(b, 1, hw)
    if lblr.dtype == jnp.bool_:
        lblr = lblr.astype(jnp.int8)

    # ---- tile sizing -------------------------------------------------------
    nb = pl.cdiv(hw, 128)                     # 128-lane blocks covering H*W
    c_sub = ((c + 7) // 8) * 8                # sublane-padded channel count
    in_item = jnp.dtype(x1.dtype).itemsize
    lbl_item = jnp.dtype(lblr.dtype).itemsize
    # Honest per-lane VMEM accounting: double-buffered input blocks, the
    # (sublane-padded) label block, the f32 accumulator scratch, and the
    # full-tile f32 temporaries the body materializes (casts, e1/e2, products)
    # plus a few (1, TILE) column arrays.
    bytes_per_lane = (
        2 * 2 * c_sub * in_item       # x1, x2 blocks: 2 pipeline buffers each
        + 2 * 8 * max(lbl_item, 4)    # label block: 2 buffers, sublane-padded
        + 8 * 4                       # f32 accumulator scratch
        + 6 * c_sub * 4               # in-kernel (C, TILE) f32 temporaries
        + 6 * 4                       # in-kernel (1, TILE) f32 temporaries
    )
    vmem_budget = 16 * 1024 * 1024
    tb_cap = max(1, (vmem_budget // bytes_per_lane) // 128)   # lane blocks/tile

    # Total spatial tiles; round up to a multiple of the 2-way spatial split so
    # both v7x TensorCores get work even at B == 1. Tiles then (nearly) divide
    # the lane-rounded H*W, so the masked tail stays small.
    split = 2 if nb >= 16 else 1
    t_total = pl.cdiv(nb, tb_cap)
    t_total = pl.cdiv(t_total, split) * split
    tb = pl.cdiv(nb, t_total)
    tile = tb * 128
    num_t = t_total // split
    last_block = pl.cdiv(hw, tile) - 1        # last valid (possibly partial) block
    maybe_masked = (t_total * tile) != hw

    def in_index_map(bi, si, ti):
        # Clamp so logical tiles past the array (possible after rounding
        # t_total up to a multiple of `split`) re-read the last valid block;
        # their contribution is fully lane-masked in the kernel.
        blk = jnp.minimum(si * num_t + ti, last_block)
        return (bi, 0, blk)

    out = pl.pallas_call(
        partial(_change_similarity_kernel, hw=hw, tile=tile, num_t=num_t,
                maybe_masked=maybe_masked),
        out_shape=jax.ShapeDtypeStruct((b, split, 1, 128), jnp.float32),
        grid_spec=pltpu.PrefetchScalarGridSpec(
            num_scalar_prefetch=0,
            grid=(b, split, num_t),
            in_specs=[
                pl.BlockSpec((None, c, tile), in_index_map),
                pl.BlockSpec((None, c, tile), in_index_map),
                pl.BlockSpec((None, 1, tile), in_index_map),
            ],
            out_specs=pl.BlockSpec((None, None, 1, 128),
                                   lambda bi, si, ti: (bi, si, 0, 0)),
            scratch_shapes=[pltpu.VMEM((1, tile), jnp.float32)],
        ),
        compiler_params=pltpu.CompilerParams(
            dimension_semantics=("parallel", "parallel", "arbitrary"),
            vmem_limit_bytes=32 * 1024 * 1024,
        ),
        cost_estimate=pl.CostEstimate(
            flops=n * (10 * c + 8),
            transcendentals=2 * c * n,
            bytes_accessed=(2 * b * c * hw * in_item + b * hw * lbl_item
                            + b * split * 128 * 4),
        ),
    )(x1r, x2r, lblr)

    # Per-(batch, split) partial sums -> mean over B*H*W pixels.
    return jnp.sum(out[:, :, 0, 0]) / n


def _reference(x1, x2, label_change):
    b, c, h, w = x1.shape
    n = b * h * w
    p1 = jax.nn.softmax(x1, axis=1)
    p2 = jax.nn.softmax(x2, axis=1)
    p1 = jnp.transpose(p1, (0, 2, 3, 1)).reshape(n, c)
    p2 = jnp.transpose(p2, (0, 2, 3, 1)).reshape(n, c)
    lbl = label_change.reshape(n).astype(jnp.float32)
    target = (lbl == 0.0).astype(jnp.float32) - lbl
    cos = jnp.sum(p1 * p2, -1) / jnp.maximum(
        jnp.linalg.norm(p1, axis=-1) * jnp.linalg.norm(p2, axis=-1), 1e-8)
    per = jnp.where(target > 0.0, 1.0 - cos, jnp.maximum(cos, 0.0))
    return jnp.mean(per)


if __name__ == "__main__":
    key = jax.random.PRNGKey(0)

    # (B, C, H, W): exact-tile, ragged (lane-masked), split, and split+ragged.
    cases = [
        (2, 4, 16, 16),    # hw = 256  — exact tile
        (1, 3, 15, 17),    # hw = 255  — ragged boundary tile (in-kernel mask)
        (1, 5, 48, 48),    # hw = 2304 — 2-way spatial split, exact
        (1, 4, 50, 50),    # hw = 2500 — 2-way split + ragged boundary
    ]
    for idx, (B, C, H, W) in enumerate(cases):
        k1, k2, k3 = jax.random.split(jax.random.fold_in(key, idx), 3)
        x1 = jax.random.normal(k1, (B, C, H, W), dtype=jnp.float32)
        x2 = jax.random.normal(k2, (B, C, H, W), dtype=jnp.float32)
        label_change = (jax.random.uniform(k3, (B, H, W)) > 0.5).astype(jnp.int32)

        loss = jax.block_until_ready(change_similarity_loss(x1, x2, label_change))
        ref = _reference(x1, x2, label_change)
        assert jnp.allclose(loss, ref, rtol=1e-5, atol=1e-5), (idx, loss, ref)

    print("KERNEL_OK")
</pallas_src>

<mosaic_0001>
module attributes {stable_mosaic.version = 11 : i64} {
  func.func @_change_similarity_kernel(%arg0: i32, %arg1: i32, %arg2: i32, %arg3: memref<1x4x256xf32, #tpu.memory_space<vmem>>, %arg4: memref<1x4x256xf32, #tpu.memory_space<vmem>>, %arg5: memref<1x1x256xi32, #tpu.memory_space<vmem>>, %arg6: memref<1x1x1x128xf32, #tpu.memory_space<vmem>>, %arg7: memref<1x256xf32, #tpu.memory_space<vmem>>) attributes {dimension_semantics = [#tpu.dimension_semantics<parallel>, #tpu.dimension_semantics<parallel>, #tpu.dimension_semantics<arbitrary>], iteration_bounds = array<i64: 2, 1, 1>, scalar_prefetch = 0 : i64, scratch_operands = 1 : i64, tpu.core_type = #tpu.core_type<tc>, window_params = [{transform_indices = @transform_0, window_bounds = array<i64: 1, 4, 256>}, {transform_indices = @transform_1, window_bounds = array<i64: 1, 4, 256>}, {transform_indices = @transform_2, window_bounds = array<i64: 1, 1, 256>}, {transform_indices = @transform_3, window_bounds = array<i64: 1, 1, 1, 128>}]} {
    %c0_i32 = arith.constant 0 : i32
    %0 = arith.cmpi eq, %arg2, %c0_i32 : i32
    %1 = arith.extui %0 : i1 to i32
    %c0_i32_0 = arith.constant 0 : i32
    %2 = arith.cmpi ne, %1, %c0_i32_0 : i32
    scf.if %2 {
      %cst_21 = arith.constant 0.000000e+00 : f32
      %42 = vector.broadcast %cst_21 : f32 to vector<1x256xf32>
      %c0_22 = arith.constant 0 : index
      %c0_23 = arith.constant 0 : index
      %43 = vector.load %arg7[%c0_22, %c0_23] : memref<1x256xf32, #tpu.memory_space<vmem>>, vector<1x256xf32>
      tpu.vector_store %arg7[%c0_22, %c0_23], %42 {strides = array<i32>} : memref<1x256xf32, #tpu.memory_space<vmem>>, vector<1x256xf32>,
    } else {
    }
    %c0 = arith.constant 0 : index
    %c0_1 = arith.constant 0 : index
    %c0_2 = arith.constant 0 : index
    %3 = vector.load %arg3[%c0, %c0_1, %c0_2] : memref<1x4x256xf32, #tpu.memory_space<vmem>>, vector<1x4x256xf32>
    %4 = vector.shape_cast %3 : vector<1x4x256xf32> to vector<4x256xf32>
    %c0_3 = arith.constant 0 : index
    %c0_4 = arith.constant 0 : index
    %c0_5 = arith.constant 0 : index
    %5 = vector.load %arg4[%c0_3, %c0_4, %c0_5] : memref<1x4x256xf32, #tpu.memory_space<vmem>>, vector<1x4x256xf32>
    %6 = vector.shape_cast %5 : vector<1x4x256xf32> to vector<4x256xf32>
    %c0_6 = arith.constant 0 : index
    %c0_7 = arith.constant 0 : index
    %c0_8 = arith.constant 0 : index
    %7 = vector.load %arg5[%c0_6, %c0_7, %c0_8] : memref<1x1x256xi32, #tpu.memory_space<vmem>>, vector<1x1x256xi32>
    %8 = vector.shape_cast %7 : vector<1x1x256xi32> to vector<1x256xi32>
    %c0_i32_9 = arith.constant 0 : i32
    %9 = vector.broadcast %c0_i32_9 : i32 to vector<1x256xi32>
    %10 = arith.cmpi eq, %8, %9 : vector<1x256xi32>
    %cst = arith.constant dense<0xFF800000> : vector<256xf32>
    %11 = vector.multi_reduction <maximumf>, %4, %cst [0] : vector<4x256xf32> to vector<256xf32>
    %12 = vector.shape_cast %11 : vector<256xf32> to vector<1x256xf32>
    %13 = vector.broadcast %12 : vector<1x256xf32> to vector<4x256xf32>
    %14 = arith.subf %4, %13 : vector<4x256xf32>
    %15 = math.exp %14 : vector<4x256xf32>
    %cst_10 = arith.constant dense<0xFF800000> : vector<256xf32>
    %16 = vector.multi_reduction <maximumf>, %6, %cst_10 [0] : vector<4x256xf32> to vector<256xf32>
    %17 = vector.shape_cast %16 : vector<256xf32> to vector<1x256xf32>
    %18 = vector.broadcast %17 : vector<1x256xf32> to vector<4x256xf32>
    %19 = arith.subf %6, %18 : vector<4x256xf32>
    %20 = math.exp %19 : vector<4x256xf32>
    %21 = arith.mulf %15, %20 : vector<4x256xf32>
    %cst_11 = arith.constant dense<0.000000e+00> : vector<256xf32>
    %22 = vector.multi_reduction <add>, %21, %cst_11 [0] : vector<4x256xf32> to vector<256xf32>
    %23 = vector.shape_cast %22 : vector<256xf32> to vector<1x256xf32>
    %24 = arith.mulf %15, %15 : vector<4x256xf32>
    %cst_12 = arith.constant dense<0.000000e+00> : vector<256xf32>
    %25 = vector.multi_reduction <add>, %24, %cst_12 [0] : vector<4x256xf32> to vector<256xf32>
    %26 = vector.shape_cast %25 : vector<256xf32> to vector<1x256xf32>
    %27 = arith.mulf %20, %20 : vector<4x256xf32>
    %cst_13 = arith.constant dense<0.000000e+00> : vector<256xf32>
    %28 = vector.multi_reduction <add>, %27, %cst_13 [0] : vector<4x256xf32> to vector<256xf32>
    %29 = vector.shape_cast %28 : vector<256xf32> to vector<1x256xf32>
    %30 = arith.mulf %26, %29 : vector<1x256xf32>
    %31 = math.rsqrt %30 : vector<1x256xf32>
    %32 = arith.mulf %23, %31 : vector<1x256xf32>
    %cst_14 = arith.constant 1.000000e+00 : f32
    %33 = vector.broadcast %cst_14 : f32 to vector<1x256xf32>
    %34 = arith.subf %33, %32 : vector<1x256xf32>
    %35 = arith.select %10, %34, %32 : vector<1x256xi1>, vector<1x256xf32>
    %c0_15 = arith.constant 0 : index
    %c0_16 = arith.constant 0 : index
    %36 = vector.load %arg7[%c0_15, %c0_16] : memref<1x256xf32, #tpu.memory_space<vmem>>, vector<1x256xf32>
    %37 = arith.addf %36, %35 : vector<1x256xf32>
    %c0_17 = arith.constant 0 : index
    %c0_18 = arith.constant 0 : index
    %38 = vector.load %arg7[%c0_17, %c0_18] : memref<1x256xf32, #tpu.memory_space<vmem>>, vector<1x256xf32>
    tpu.vector_store %arg7[%c0_17, %c0_18], %37 {strides = array<i32>} : memref<1x256xf32, #tpu.memory_space<vmem>>, vector<1x256xf32>,
    %c0_i32_19 = arith.constant 0 : i32
    %39 = arith.cmpi eq, %arg2, %c0_i32_19 : i32
    %40 = arith.extui %39 : i1 to i32
    %c0_i32_20 = arith.constant 0 : i32
    %41 = arith.cmpi ne, %40, %c0_i32_20 : i32
    scf.if %41 {
      %c0_21 = arith.constant 0 : index
      %c0_22 = arith.constant 0 : index
      %42 = vector.load %arg7[%c0_21, %c0_22] : memref<1x256xf32, #tpu.memory_space<vmem>>, vector<1x256xf32>
      %cst_23 = arith.constant dense<0.000000e+00> : vector<1xf32>
      %43 = vector.multi_reduction <add>, %42, %cst_23 [1] : vector<1x256xf32> to vector<1xf32>
      %44 = vector.shape_cast %43 : vector<1xf32> to vector<1x1xf32>
      %45 = vector.shape_cast %44 : vector<1x1xf32> to vector<1x1xf32>
      %46 = vector.broadcast %45 : vector<1x1xf32> to vector<1x128xf32>
      %c0_24 = arith.constant 0 : index
      %c0_25 = arith.constant 0 : index
      %c0_26 = arith.constant 0 : index
      %c0_27 = arith.constant 0 : index
      %47 = vector.load %arg6[%c0_24, %c0_25, %c0_26, %c0_27] : memref<1x1x1x128xf32, #tpu.memory_space<vmem>>, vector<1x1x1x128xf32>
      %48 = vector.shape_cast %47 : vector<1x1x1x128xf32> to vector<1x128xf32>
      %49 = vector.shape_cast %46 : vector<1x128xf32> to vector<1x1x1x128xf32>
      tpu.vector_store %arg6[%c0_24, %c0_25, %c0_26, %c0_27], %49 {strides = array<i32>} : memref<1x1x1x128xf32, #tpu.memory_space<vmem>>, vector<1x1x1x128xf32>,
    } else {
    }
    return
  }
  func.func @transform_0(%arg0: i32, %arg1: i32, %arg2: i32) -> (i32, i32, i32) {
    %c1_i32 = arith.constant 1 : i32
    %0 = arith.muli %arg1, %c1_i32 : i32
    %1 = arith.addi %0, %arg2 : i32
    %c0_i32 = arith.constant 0 : i32
    %2 = arith.minsi %1, %c0_i32 : i32
    %c0_i32_0 = arith.constant 0 : i32
    %c0_i32_1 = arith.constant 0 : i32
    return %arg0, %c0_i32_0, %2 : i32, i32, i32
  }
  func.func @transform_1(%arg0: i32, %arg1: i32, %arg2: i32) -> (i32, i32, i32) {
    %c1_i32 = arith.constant 1 : i32
    %0 = arith.muli %arg1, %c1_i32 : i32
    %1 = arith.addi %0, %arg2 : i32
    %c0_i32 = arith.constant 0 : i32
    %2 = arith.minsi %1, %c0_i32 : i32
    %c0_i32_0 = arith.constant 0 : i32
    %c0_i32_1 = arith.constant 0 : i32
    return %arg0, %c0_i32_0, %2 : i32, i32, i32
  }
  func.func @transform_2(%arg0: i32, %arg1: i32, %arg2: i32) -> (i32, i32, i32) {
    %c1_i32 = arith.constant 1 : i32
    %0 = arith.muli %arg1, %c1_i32 : i32
    %1 = arith.addi %0, %arg2 : i32
    %c0_i32 = arith.constant 0 : i32
    %2 = arith.minsi %1, %c0_i32 : i32
    %c0_i32_0 = arith.constant 0 : i32
    %c0_i32_1 = arith.constant 0 : i32
    return %arg0, %c0_i32_0, %2 : i32, i32, i32
  }
  func.func @transform_3(%arg0: i32, %arg1: i32, %arg2: i32) -> (i32, i32, i32, i32) {
    %c0_i32 = arith.constant 0 : i32
    %c0_i32_0 = arith.constant 0 : i32
    %c0_i32_1 = arith.constant 0 : i32
    return %arg0, %arg1, %c0_i32, %c0_i32_0 : i32, i32, i32, i32
  }
}

</mosaic_0001>

<llo_original>
// kernel: tpu_custom_call.1
$region0: #{tpu_custom_call.1}
  #allocation0 [shape = 'u32[]', space=smem, size = 0x4, offset = 0x4, fixed_abs, tag = 'smem constant byte address 0x4 - core index']
  #allocation1 [shape = 'u32[144,128]{1,0:T(1,128)}', space=vmem, size = 0x12000, scoped, tag = 'internal scratch']
  #allocation2 [shape = 'f32[1,256]{1,0:T(1,128)}', space=vmem, size = 0x400, scoped, tag = 'scratch operand']
  %s0 = inlined_call_operand.hbm [shape: f32[2,4,256], index: 0, kind: input, shape index: {}]
  %s1 = inlined_call_operand.hbm [shape: f32[2,4,256], index: 1, kind: input, shape index: {}]
  %s2 = inlined_call_operand.vmem [shape: s32[2,1,256], index: 2, kind: input, shape index: {}]
  %s3 = inlined_call_operand.hbm [shape: f32[2,1,1,128], index: 3, kind: output, shape index: {}]
  %s4 = sld [smem:[#allocation0]]
  $region61: #{tpu_custom_call.1} parent=0
    _
  %s6 = ssub.s32 1, %s4
  %s7 = scalar_select 0, %s6, %s4
  $region1: #{tpu_custom_call.1} parent=0
    #allocation3 [shape = 'u8[8192]{0}', space=vmem, size = 0x2000, scoped, tag = 'input window, operand 0']
    #allocation4 [shape = 's32[2]{0}', space=sflag, size = 0x8, scoped, tag = 'scoped memory for tpu_custom_call.1']
    #allocation5 [shape = 's32[2]{0}', space=sflag, size = 0x8, scoped, tag = 'scoped memory for tpu_custom_call.1']
    #allocation6 [shape = 'u8[8192]{0}', space=vmem, size = 0x2000, scoped, tag = 'input window, operand 1']
    #allocation7 [shape = 's32[2]{0}', space=sflag, size = 0x8, scoped, tag = 'scoped memory for tpu_custom_call.1']
    #allocation8 [shape = 'u8[1024]{0}', space=vmem, size = 0x400, scoped, tag = 'output window, operand 0']
    %8 = vsyncpa [#allocation4], 0
    %s9 = scalar_lea.sflag [#allocation4], 1
    %10 = vsyncpa %s9, 0
    %11 = vsyncpa [#allocation7], 0
    %s12 = scalar_lea.sflag [#allocation7], 1
    %13 = vsyncpa %s12, 0
    %14 = vsyncpa [#allocation5], 0
    %s15 = scalar_lea.sflag [#allocation5], 1
    %16 = vsyncpa %s15, 0
    loop: start=0, step=1, limit=4
    $region2: #{tpu_custom_call.1} parent=1 // loop_pre_header
      _
    $region3: #{tpu_custom_call.1} parent=1 // loop_header
      %s18 = sphi 0, %s22
      %p19 = scmp.ge.s32.totalorder %s18, 4
      %s25 = sphi 0, %s44
      %s26 = sphi 0, %s40
      %s27 = sphi 0, %s36
      %s28 = sphi 0, %s25
      %s29 = sphi 0, %s26
      %s30 = sphi 0, %s27
      %s31 = sphi 0, %s28
      %s32 = sphi 0, %s29
      %s33 = sphi 0, %s30
      %s55 = sphi 0, %s57
      %s58 = sphi 0, %s55
      %s59 = sphi 0, %s58
      %s75 = sphi 0, %s59
      %s89 = sphi 0, %s91
      %s92 = sphi 0, %s89
      %s93 = sphi 0, %s92
      %s109 = sphi 0, %s93
      %s123 = sphi 0, %s125
      %s126 = sphi 0, %s123
      %s127 = sphi 0, %s126
      %s143 = sphi 0, %s127
      %s151 = sphi 0, %s153
      %s154 = sphi 0, %s151
      %s155 = sphi 0, %s154
      %s171 = sphi 0, %s155
    $region4: #{tpu_custom_call.1} parent=1 // loop_header_branch
      %21 = sbr.rel (%p19) target = $region8
    $region5: #{tpu_custom_call.1} parent=1 // loop_body
      %s23 = ssub.s32 %s18, 1
      %s24 = ssub.s32 %s18, 2
      %s34 = sadd.s32 1, %s27
      %p35 = scmp.ge.s32.totalorder %s34, 1
      %s36 = scalar_select %p35, 0, %s34
      %s37 = sadd.s32 1, %s26
      %s38 = scalar_select %p35, %s37, %s26
      %p39 = scmp.ge.s32.totalorder %s38, 1
      %s40 = scalar_select %p39, 0, %s38
      %s41 = sadd.s32 1, %s25
      %s42 = scalar_select %p39, %s41, %s25
      %p43 = scmp.ge.s32.totalorder %s42, 2
      %s44 = scalar_select %p43, 0, %s42
      %s45 = sadd.s32 %s26, %s27
      %p46 = scmp.lt.s32.totalorder %s45, 0
      %s47 = scalar_select %p46, %s45, 0
      %s48 = sadd.s32 %s40, %s36
      %p49 = scmp.lt.s32.totalorder %s48, 0
      %s50 = scalar_select %p49, %s48, 0
      %s51 = ssub.s32 %s25, %s44
      %s52 = ssub.s32 %s47, %s50
      %s53 = sor.u32 %s51, %s52
      %p54 = scmp.eq.s32.totalorder %s53, 0
      %s56 = sadd.s32 %s55, 1
      %s57 = scalar_select %p54, %s55, %s56
      %p60 = pneg %p54
      %p61 = scmp.eq.s32.totalorder %s18, 1
      %p62 = por %p60, %p61
      %p63 = scmp.ne.s32.totalorder %s55, %s58
      %p64 = scmp.eq.s32.totalorder %s18, 0
      %p65 = por %p63, %p64
      %p66 = scmp.ne.s32.totalorder %s55, %s58
      %p67 = scmp.eq.s32.totalorder %s23, 1
      %p68 = por %p66, %p67
      %p69 = scmp.ne.s32.totalorder %s58, %s59
      %p70 = scmp.eq.s32.totalorder %s23, 0
      %p71 = por %p69, %p70
      %p72 = scmp.ne.s32.totalorder %s58, %s59
      %p73 = scmp.eq.s32.totalorder %s24, 1
      %p74 = por %p72, %p73
      %p76 = scmp.ne.s32.totalorder %s59, %s75
      %p77 = scmp.eq.s32.totalorder %s24, 0
      %p78 = por %p76, %p77
      %s79 = sadd.s32 %s26, %s27
      %p80 = scmp.lt.s32.totalorder %s79, 0
      %s81 = scalar_select %p80, %s79, 0
      %s82 = sadd.s32 %s40, %s36
      %p83 = scmp.lt.s32.totalorder %s82, 0
      %s84 = scalar_select %p83, %s82, 0
      %s85 = ssub.s32 %s25, %s44
      %s86 = ssub.s32 %s81, %s84
      %s87 = sor.u32 %s85, %s86
      %p88 = scmp.eq.s32.totalorder %s87, 0
      %s90 = sadd.s32 %s89, 1
      %s91 = scalar_select %p88, %s89, %s90
      %p94 = pneg %p88
      %p95 = scmp.eq.s32.totalorder %s18, 1
      %p96 = por %p94, %p95
      %p97 = scmp.ne.s32.totalorder %s89, %s92
      %p98 = scmp.eq.s32.totalorder %s18, 0
      %p99 = por %p97, %p98
      %p100 = scmp.ne.s32.totalorder %s89, %s92
      %p101 = scmp.eq.s32.totalorder %s23, 1
      %p102 = por %p100, %p101
      %p103 = scmp.ne.s32.totalorder %s92, %s93
      %p104 = scmp.eq.s32.totalorder %s23, 0
      %p105 = por %p103, %p104
      %p106 = scmp.ne.s32.totalorder %s92, %s93
      %p107 = scmp.eq.s32.totalorder %s24, 1
      %p108 = por %p106, %p107
      %p110 = scmp.ne.s32.totalorder %s93, %s109
      %p111 = scmp.eq.s32.totalorder %s24, 0
      %p112 = por %p110, %p111
      %s113 = sadd.s32 %s26, %s27
      %p114 = scmp.lt.s32.totalorder %s113, 0
      %s115 = scalar_select %p114, %s113, 0
      %s116 = sadd.s32 %s40, %s36
      %p117 = scmp.lt.s32.totalorder %s116, 0
      %s118 = scalar_select %p117, %s116, 0
      %s119 = ssub.s32 %s25, %s44
      %s120 = ssub.s32 %s115, %s118
      %s121 = sor.u32 %s119, %s120
      %p122 = scmp.eq.s32.totalorder %s121, 0
      %s124 = sadd.s32 %s123, 1
      %s125 = scalar_select %p122, %s123, %s124
      %p128 = pneg %p122
      %p129 = scmp.eq.s32.totalorder %s18, 1
      %p130 = por %p128, %p129
      %p131 = scmp.ne.s32.totalorder %s123, %s126
      %p132 = scmp.eq.s32.totalorder %s18, 0
      %p133 = por %p131, %p132
      %p134 = scmp.ne.s32.totalorder %s123, %s126
      %p135 = scmp.eq.s32.totalorder %s23, 1
      %p136 = por %p134, %p135
      %p137 = scmp.ne.s32.totalorder %s126, %s127
      %p138 = scmp.eq.s32.totalorder %s23, 0
      %p139 = por %p137, %p138
      %p140 = scmp.ne.s32.totalorder %s126, %s127
      %p141 = scmp.eq.s32.totalorder %s24, 1
      %p142 = por %p140, %p141
      %p144 = scmp.ne.s32.totalorder %s127, %s143
      %p145 = scmp.eq.s32.totalorder %s24, 0
      %p146 = por %p144, %p145
      %s147 = ssub.s32 %s25, %s44
      %s148 = ssub.s32 %s26, %s40
      %s149 = sor.u32 %s147, %s148
      %p150 = scmp.eq.s32.totalorder %s149, 0
      %s152 = sadd.s32 %s151, 1
      %s153 = scalar_select %p150, %s151, %s152
      %p156 = pneg %p150
      %p157 = scmp.eq.s32.totalorder %s18, 1
      %p158 = por %p156, %p157
      %p159 = scmp.ne.s32.totalorder %s151, %s154
      %p160 = scmp.eq.s32.totalorder %s18, 0
      %p161 = por %p159, %p160
      %p162 = scmp.ne.s32.totalorder %s151, %s154
      %p163 = scmp.eq.s32.totalorder %s23, 1
      %p164 = por %p162, %p163
      %p165 = scmp.ne.s32.totalorder %s154, %s155
      %p166 = scmp.eq.s32.totalorder %s23, 0
      %p167 = por %p165, %p166
      %p168 = scmp.ne.s32.totalorder %s154, %s155
      %p169 = scmp.eq.s32.totalorder %s24, 1
      %p170 = por %p168, %p169
      %p172 = scmp.ne.s32.totalorder %s155, %s171
      %p173 = scmp.eq.s32.totalorder %s24, 0
      %p174 = por %p172, %p173
      %p175 = scmp.le.s32.totalorder 1, %s18
      %p176 = scmp.lt.s32.totalorder %s18, 3
      %p177 = pnand %p175, %p176
      %p178 = pneg %p177
      // Predicated region
      $region9: #{tpu_custom_call.1} parent=5 // pred_check
        _
      $region10: #{tpu_custom_call.1} parent=5 // pred_check_branch
        %180 = sbr.rel (%p177) target = $region12
      $region11: #{tpu_custom_call.1} parent=5 // pred_region
        %s181 = ssub.s32 %s18, 1
      $region12: #{tpu_custom_call.1} parent=5 // pred_fallthru
        _
      %p182 = scmp.lt.s32.totalorder %s18, 2
      // Predicated region
      $region13: #{tpu_custom_call.1} parent=5 // pred_check
        %p183 = pneg %p182
      $region14: #{tpu_custom_call.1} parent=5 // pred_check_branch
        %185 = sbr.rel (%p183) target = $region16
      $region15: #{tpu_custom_call.1} parent=5 // pred_region
        // Predicated region
        $region17: #{tpu_custom_call.1} parent=15 // pred_check
          %p186 = pneg %p65
        $region18: #{tpu_custom_call.1} parent=15 // pred_check_branch
          %188 = sbr.rel (%p186) target = $region20
        $region19: #{tpu_custom_call.1} parent=15 // pred_region
          %s189 = sand.u32 %s55, 1
          %s190 = scalar_lea.sflag [#allocation4], %s189
          %s191 = sand.u32 %s55, 1
          %s192 = smul.addr %s191, 8
          %s193 = scalar_lea.vmem [#allocation3], %s192
          %s194 = sadd.s32 %s26, %s27
          %p195 = scmp.lt.s32.totalorder %s194, 0
          %s196 = scalar_select %p195, %s194, 0
          %s197 = smul.u32 2, %s196
          %s199 = ssub.s32 128, 128
          %200 = vsyncadd %s190, %s199
          %s201 = smul.addr %s25, 2
          %s202 = sadd.s32 %s197, %s201
          %s203 = smul.addr %s202, 64
          %s204 = scalar_lea.hbm %s0, %s203
          %s206 = sshll.u32 %s193, 4
          %s207 = int_to_ptr.vmem [resolvable:$true] %s206
          %209 = dma.hbm_to_vmem [thread:$0]  %s204, 128, %s207, %s190
        $region20: #{tpu_custom_call.1} parent=15 // pred_fallthru
          _
        // Predicated region
        $region21: #{tpu_custom_call.1} parent=15 // pred_check
          %p210 = pneg %p99
        $region22: #{tpu_custom_call.1} parent=15 // pred_check_branch
          %212 = sbr.rel (%p210) target = $region24
        $region23: #{tpu_custom_call.1} parent=15 // pred_region
          %s213 = sand.u32 %s89, 1
          %s214 = scalar_lea.sflag [#allocation7], %s213
          %s215 = sand.u32 %s89, 1
          %s216 = smul.addr %s215, 8
          %s217 = scalar_lea.vmem [#allocation6], %s216
          %s218 = sadd.s32 %s26, %s27
          %p219 = scmp.lt.s32.totalorder %s218, 0
          %s220 = scalar_select %p219, %s218, 0
          %s221 = smul.u32 2, %s220
          %s223 = ssub.s32 128, 128
          %224 = vsyncadd %s214, %s223
          %s225 = smul.addr %s25, 2
          %s226 = sadd.s32 %s221, %s225
          %s227 = smul.addr %s226, 64
          %s228 = scalar_lea.hbm %s1, %s227
          %s230 = sshll.u32 %s217, 4
          %s231 = int_to_ptr.vmem [resolvable:$true] %s230
          %233 = dma.hbm_to_vmem [thread:$0]  %s228, 128, %s231, %s214
        $region24: #{tpu_custom_call.1} parent=15 // pred_fallthru
          _
        // Predicated region
        $region25: #{tpu_custom_call.1} parent=15 // pred_check
          %p234 = pneg %p133
        $region26: #{tpu_custom_call.1} parent=15 // pred_check_branch
          %236 = sbr.rel (%p234) target = $region28
        $region27: #{tpu_custom_call.1} parent=15 // pred_region
          %s237 = sadd.s32 %s26, %s27
          %p238 = scmp.lt.s32.totalorder %s237, 0
          %s239 = scalar_select %p238, %s237, 0
          %s240 = smul.u32 2, %s239
          %p241 = scmp.lt.s32.totalorder %s25, 1
          %s242 = scalar_select %p241, %s25, 1
          %p243 = scmp.lt.s32.totalorder %s240, 1
          %s244 = scalar_select %p243, %s240, 1
          %s245 = smul.addr %s242, 2
          %s246 = sadd.s32 %s244, %s245
          %s247 = scalar_lea.vmem %s2, %s246
          %s248 = sadd.s32 %s26, %s27
          %p249 = scmp.lt.s32.totalorder %s248, 0
          %s250 = scalar_select %p249, %s248, 0
          %s251 = smul.u32 2, %s250
        $region28: #{tpu_custom_call.1} parent=15 // pred_fallthru
          _
      $region16: #{tpu_custom_call.1} parent=5 // pred_fallthru
        _
      %p252 = scmp.le.s32.totalorder 1, %s18
      %p253 = scmp.lt.s32.totalorder %s18, 3
      %p254 = pnand %p252, %p253
      %p255 = pneg %p254
      // Predicated region
      $region29: #{tpu_custom_call.1} parent=5 // pred_check
        _
      $region30: #{tpu_custom_call.1} parent=5 // pred_check_branch
        %257 = sbr.rel (%p254) target = $region32
      $region31: #{tpu_custom_call.1} parent=5 // pred_region
        %s258 = ssub.s32 %s18, 1
        %s259 = sand.u32 %s58, 1
        %s260 = scalar_lea.sflag [#allocation4], %s259
        %s261 = sand.u32 %s58, 1
        %s262 = smul.addr %s261, 8
        %s263 = scalar_lea.vmem [#allocation3], %s262
        // Predicated region
        $region33: #{tpu_custom_call.1} parent=31 // pred_check
          %p264 = pneg %p71
        $region34: #{tpu_custom_call.1} parent=31 // pred_check_branch
          %266 = sbr.rel (%p264) target = $region36
        $region35: #{tpu_custom_call.1} parent=31 // pred_region
          %267 = dma.done %s260, 128
        $region36: #{tpu_custom_call.1} parent=31 // pred_fallthru
          _
        %s268 = sand.u32 %s92, 1
        %s269 = scalar_lea.sflag [#allocation7], %s268
        %s270 = sand.u32 %s92, 1
        %s271 = smul.addr %s270, 8
        %s272 = scalar_lea.vmem [#allocation6], %s271
        // Predicated region
        $region37: #{tpu_custom_call.1} parent=31 // pred_check
          %p273 = pneg %p105
        $region38: #{tpu_custom_call.1} parent=31 // pred_check_branch
          %275 = sbr.rel (%p273) target = $region40
        $region39: #{tpu_custom_call.1} parent=31 // pred_region
          %276 = dma.done %s269, 128
        $region40: #{tpu_custom_call.1} parent=31 // pred_fallthru
          _
        %s277 = sand.u32 %s58, 1
        %s278 = scalar_lea.sflag [#allocation4], %s277
        %s279 = sand.u32 %s58, 1
        %s280 = smul.addr %s279, 8
        %s281 = scalar_lea.vmem [#allocation3], %s280
        %p282 = pneg %p71
        %p283 = pneg %p68
        %s284 = sand.u32 %s92, 1
        %s285 = scalar_lea.sflag [#allocation7], %s284
        %s286 = sand.u32 %s92, 1
        %s287 = smul.addr %s286, 8
        %s288 = scalar_lea.vmem [#allocation6], %s287
        %p289 = pneg %p105
        %p290 = pneg %p102
        %s291 = sadd.s32 %s29, %s30
        %p292 = scmp.lt.s32.totalorder %s291, 0
        %s293 = scalar_select %p292, %s291, 0
        %s294 = smul.u32 2, %s293
        %p295 = scmp.lt.s32.totalorder %s28, 1
        %s296 = scalar_select %p295, %s28, 1
        %p297 = scmp.lt.s32.totalorder %s294, 1
        %s298 = scalar_select %p297, %s294, 1
        %s299 = smul.addr %s296, 2
        %s300 = sadd.s32 %s298, %s299
        %s301 = scalar_lea.vmem %s2, %s300
        %p302 = pneg %p139
        %p303 = pneg %p136
        %p304 = pneg %p167
        %p305 = pneg %p164
        %s306 = sand.u32 %s154, 1
        %s307 = scalar_lea.sflag [#allocation5], %s306
        %s308 = sand.u32 %s154, 1
        %s309 = scalar_lea.vmem [#allocation8], %s308
        %s310 = sadd.s32 %s29, %s30
        %p311 = scmp.lt.s32.totalorder %s310, 0
        %s312 = scalar_select %p311, %s310, 0
        %s313 = smul.u32 2, %s312
        %s314 = sadd.s32 %s29, %s30
        %p315 = scmp.lt.s32.totalorder %s314, 0
        %s316 = scalar_select %p315, %s314, 0
        %s317 = smul.u32 2, %s316
        %s318 = sadd.s32 %s29, %s30
        %p319 = scmp.lt.s32.totalorder %s318, 0
        %s320 = scalar_select %p319, %s318, 0
        %s321 = smul.u32 2, %s320
        %p322 = scmp.lt.s32.totalorder %s28, 1
        %s323 = scalar_select %p322, %s28, 1
        %p324 = scmp.lt.s32.totalorder %s321, 1
        %s325 = scalar_select %p324, %s321, 1
        %s326 = smul.addr %s323, 2
        %s327 = sadd.s32 %s325, %s326
        %s328 = scalar_lea.vmem %s2, %s327
        %s329 = sadd.s32 %s29, %s30
        %p330 = scmp.lt.s32.totalorder %s329, 0
        %s331 = scalar_select %p330, %s329, 0
        %s332 = smul.u32 2, %s331
        %p333 = scmp.eq.s32.totalorder %s30, 0
        // Predicated region
        $region41: #{tpu_custom_call.1} parent=31 // pred_check
          %p334 = pneg %p333
        $region42: #{tpu_custom_call.1} parent=31 // pred_check_branch
          %336 = sbr.rel (%p334) target = $region44
        $region43: #{tpu_custom_call.1} parent=31 // pred_region
          %v337 = vlaneseq
          %vm338 = vcmp.ge.s32.totalorder %v337, 0
          %vm339 = vcmp.lt.s32.totalorder %v337, 256
          %vm340 = vmand %vm338, %vm339
          %341 = vst.msk [vmem:[#allocation2] sm:$0x3] %vm340, 0.0
        $region44: #{tpu_custom_call.1} parent=31 // pred_fallthru
          _
        %v342 = vld [vmem:[%s263] sm:$0xff]
        %v343 = vld [vmem:[%s272] sm:$0xff]
        %v344 = vld [vmem:[%s328] sm:$0x3]
        %vm345 = vcmp.eq.s32.totalorder %v344, 0
        %v347 = vcombine.high %v342, %v342
        %vm349 = vcmask 1043456
        %v350 = vsel %vm349, %v342, -inf
        %v351 = vrot.slane %v350, 4
        %v352 = vmax.f32 %v350, %v351
        %v353 = vrot.slane %v352, 2
        %v354 = vmax.f32 %v352, %v353
        %v355 = vrot.slane %v354, 1
        %v356 = vmax.f32 %v354, %v355
        %v357 = vsel %vm349, %v347, -inf
        %v358 = vrot.slane %v357, 4
        %v359 = vmax.f32 %v357, %v358
        %v360 = vrot.slane %v359, 2
        %v361 = vmax.f32 %v359, %v360
        %v362 = vrot.slane %v361, 1
        %v363 = vmax.f32 %v361, %v362
        %v366 = vcombine.low %v356, %v363
        %v368 = vsub.f32 %v342, %v366
        %v369 = vmul.f32 %v368, 1.442695
        %v370 = vpow.pop %v369
        %v372 = vcombine.high %v343, %v343
        %v374 = vsel %vm349, %v343, -inf
        %v375 = vrot.slane %v374, 4
        %v376 = vmax.f32 %v374, %v375
        %v377 = vrot.slane %v376, 2
        %v378 = vmax.f32 %v376, %v377
        %v379 = vrot.slane %v378, 1
        %v380 = vmax.f32 %v378, %v379
        %v381 = vsel %vm349, %v372, -inf
        %v382 = vrot.slane %v381, 4
        %v383 = vmax.f32 %v381, %v382
        %v384 = vrot.slane %v383, 2
        %v385 = vmax.f32 %v383, %v384
        %v386 = vrot.slane %v385, 1
        %v387 = vmax.f32 %v385, %v386
        %v390 = vcombine.low %v380, %v387
        %v392 = vsub.f32 %v343, %v390
        %v393 = vmul.f32 %v392, 1.442695
        %v394 = vpow.pop %v393
        %v395 = vmul.f32 %v370, %v394
        %v397 = vcombine.high %v395, %v395
        %v399 = vsel %vm349, %v395, 0.0
        %v400 = vrot.slane %v399, 4
        %v401 = vadd.f32 %v399, %v400
        %v402 = vrot.slane %v401, 2
        %v403 = vadd.f32 %v401, %v402
        %v404 = vrot.slane %v403, 1
        %v405 = vadd.f32 %v403, %v404
        %v406 = vsel %vm349, %v397, 0.0
        %v407 = vrot.slane %v406, 4
        %v408 = vadd.f32 %v406, %v407
        %v409 = vrot.slane %v408, 2
        %v410 = vadd.f32 %v408, %v409
        %v411 = vrot.slane %v410, 1
        %v412 = vadd.f32 %v410, %v411
        %v413 = vmul.f32 %v370, %v370
        %v415 = vcombine.high %v413, %v413
        %v417 = vsel %vm349, %v413, 0.0
        %v418 = vrot.slane %v417, 4
        %v419 = vadd.f32 %v417, %v418
        %v420 = vrot.slane %v419, 2
        %v421 = vadd.f32 %v419, %v420
        %v422 = vrot.slane %v421, 1
        %v423 = vadd.f32 %v421, %v422
        %v424 = vsel %vm349, %v415, 0.0
        %v425 = vrot.slane %v424, 4
        %v426 = vadd.f32 %v424, %v425
        %v427 = vrot.slane %v426, 2
        %v428 = vadd.f32 %v426, %v427
        %v429 = vrot.slane %v428, 1
        %v430 = vadd.f32 %v428, %v429
        %v431 = vmul.f32 %v394, %v394
        %v433 = vcombine.high %v431, %v431
        %v435 = vsel %vm349, %v431, 0.0
        %v436 = vrot.slane %v435, 4
        %v437 = vadd.f32 %v435, %v436
        %v438 = vrot.slane %v437, 2
        %v439 = vadd.f32 %v437, %v438
        %v440 = vrot.slane %v439, 1
        %v441 = vadd.f32 %v439, %v440
        %v442 = vsel %vm349, %v433, 0.0
        %v443 = vrot.slane %v442, 4
        %v444 = vadd.f32 %v442, %v443
        %v445 = vrot.slane %v444, 2
        %v446 = vadd.f32 %v444, %v445
        %v447 = vrot.slane %v446, 1
        %v448 = vadd.f32 %v446, %v447
        %v449 = vmul.f32 %v423, %v441
        %v450 = vmul.f32 %v430, %v448
        %v451 = vrsqrt.pop %v449
        %v452 = vrsqrt.pop %v450
        %v453 = vmul.f32 %v405, %v451
        %v454 = vmul.f32 %v412, %v452
        %v455 = vsub.f32 1.0, %v453
        %v456 = vsub.f32 1.0, %v454
        %v459 = vcombine.low %v455, %v456
        %v461 = vunpack.c.l.s4 1966171168
        %v462 = vunpack.c.0.s8 %v461
        %v463 = vlaneseq
        %v464 = vshrl.u32 %v463, 7
        %v465 = vsub.s32 %v462, %v464
        %v466 = vrot.slane %v459, %v465
        %v468 = vunpack.c.l.s4 1966171168
        %v469 = vunpack.c.0.s8 %v468
        %v470 = vlaneseq
        %v471 = vshrl.u32 %v470, 7
        %v472 = vsub.s32 %v469, %v471
        %v473 = vrot.slane %v466, %v472
        %v477 = vcombine.low %v453, %v454
        %v479 = vunpack.c.l.s4 1966171168
        %v480 = vunpack.c.0.s8 %v479
        %v481 = vlaneseq
        %v482 = vshrl.u32 %v481, 7
        %v483 = vsub.s32 %v480, %v482
        %v484 = vrot.slane %v477, %v483
        %v486 = vunpack.c.l.s4 1966171168
        %v487 = vunpack.c.0.s8 %v486
        %v488 = vlaneseq
        %v489 = vshrl.u32 %v488, 7
        %v490 = vsub.s32 %v487, %v489
        %v491 = vrot.slane %v484, %v490
        %v493 = vsel %vm345, %v473, %v491
        %v494 = vld [vmem:[#allocation2] sm:$0x3]
        %v495 = vadd.f32 %v494, %v493
        %v496 = vlaneseq
        %vm497 = vcmp.ge.s32.totalorder %v496, 0
        %vm498 = vcmp.lt.s32.totalorder %v496, 256
        %vm499 = vmand %vm497, %vm498
        %500 = vst.msk [vmem:[#allocation2] sm:$0x3] %vm499, %v495
        // Predicated region
        $region45: #{tpu_custom_call.1} parent=31 // pred_check
          %p501 = pneg %p333
        $region46: #{tpu_custom_call.1} parent=31 // pred_check_branch
          %503 = sbr.rel (%p501) target = $region48
        $region47: #{tpu_custom_call.1} parent=31 // pred_region
          %v504 = vld [vmem:[#allocation2] sm:$0x3]
          %v506 = vlaneseq
          %v507 = vshrl.u32 %v506, 7
          %v508 = vsub.s32 0, %v507
          %v509 = vrot.slane %v504, %v508
          %v510 = vlaneseq
          %v511 = vshrl.u32 %v510, 7
          %v512 = vsub.s32 1, %v511
          %v513 = vrot.slane %v504, %v512
          %vm516 = vcmask 1040384
          %v517 = vsel %vm516, %v509, 0.0
          %v518 = vsel %vm516, %v513, 0.0
          %v519 = vadd.f32 %v517, %v518
          %520 = vadd.xlane.f32.xlu0 %v519
          %v521 = vpop.xlane.xlu0 %520
          %522 = vst [vmem:[%s309] sm:$0x1] %v521
        $region48: #{tpu_custom_call.1} parent=31 // pred_fallthru
          _
        %s523 = sand.u32 %s154, 1
        %s524 = scalar_lea.sflag [#allocation5], %s523
        %s525 = sand.u32 %s154, 1
        %s526 = scalar_lea.vmem [#allocation8], %s525
        // Predicated region
        $region49: #{tpu_custom_call.1} parent=31 // pred_check
          %p527 = pneg %p164
        $region50: #{tpu_custom_call.1} parent=31 // pred_check_branch
          %529 = sbr.rel (%p527) target = $region52
        $region51: #{tpu_custom_call.1} parent=31 // pred_region
          %s531 = ssub.s32 16, 16
          %532 = vsyncadd %s524, %s531
          %s533 = sadd.s32 %s29, %s28
          %s534 = smul.addr %s533, 16
          %s535 = scalar_lea.hbm %s3, %s534
          %s537 = sshll.u32 %s526, 4
          %s538 = int_to_ptr.vmem [resolvable:$true] %s537
          %540 = dma.vmem_to_hbm [thread:$0]  %s538, 16, %s535, %s524
        $region52: #{tpu_custom_call.1} parent=31 // pred_fallthru
          _
      $region32: #{tpu_custom_call.1} parent=5 // pred_fallthru
        _
      %p541 = scmp.le.s32.totalorder 2, %s18
      // Predicated region
      $region53: #{tpu_custom_call.1} parent=5 // pred_check
        %p542 = pneg %p541
      $region54: #{tpu_custom_call.1} parent=5 // pred_check_branch
        %544 = sbr.rel (%p542) target = $region56
      $region55: #{tpu_custom_call.1} parent=5 // pred_region
        %s545 = ssub.s32 %s18, 2
        // Predicated region
        $region57: #{tpu_custom_call.1} parent=55 // pred_check
          %p546 = pneg %p170
        $region58: #{tpu_custom_call.1} parent=55 // pred_check_branch
          %548 = sbr.rel (%p546) target = $region60
        $region59: #{tpu_custom_call.1} parent=55 // pred_region
          %s549 = sand.u32 %s155, 1
          %s550 = scalar_lea.sflag [#allocation5], %s549
          %s551 = sand.u32 %s155, 1
          %s552 = scalar_lea.vmem [#allocation8], %s551
          %553 = dma.done %s550, 16
        $region60: #{tpu_custom_call.1} parent=55 // pred_fallthru
          _
      $region56: #{tpu_custom_call.1} parent=5 // pred_fallthru
        _
    $region6: #{tpu_custom_call.1} parent=1 // loop_footer
      %s22 = sadd.s32 1, %s18
    $region7: #{tpu_custom_call.1} parent=1 // loop_footer_branch
      %17 = sbr.rel target = $region3
    $region8: #{tpu_custom_call.1} parent=1 // loop_exit
      _
    %554 = vsyncpa [#allocation4], 1
    %s555 = scalar_lea.sflag [#allocation4], 1
    %556 = vsyncpa %s555, 1
    %557 = vsyncpa [#allocation7], 1
    %s558 = scalar_lea.sflag [#allocation7], 1
    %559 = vsyncpa %s558, 1
    %560 = vsyncpa [#allocation5], 1
    %s561 = scalar_lea.sflag [#allocation5], 1
    %562 = vsyncpa %s561, 1

</llo_original>
